<compile_context>
chip_gen: v6e
topology: v6e:2x2x1
jax: 0.10.0
libtpu: 0.0.40
codegen_flags: <defaults>
</compile_context>

<pallas_src>
import functools

import jax
import jax.numpy as jnp
from jax.experimental import pallas as pl
from jax.experimental.pallas import tpu as pltpu

LANE = 128


def _round_up(n, m):
    return ((n + m - 1) // m) * m


def _qnet_kernel(x_ref, w1_ref, b1_ref, w2_ref, b2_ref,
                 w3_ref, b3_ref, w4_ref, b4_ref, o_ref):
    """Fused MLP: relu(relu(relu(x@W1+b1)@W2+b2)@W3+b3)@W4+b4.

    x and fc1 stay in f32 (VPU); fc2..fc4 use bf16 MXU inputs with f32
    accumulation; bias+ReLU+cast are fused so no f32 activation is kept live.
    """
    bf16 = jnp.bfloat16
    d_in = x_ref.shape[1]

    # ---- fc1 ----
    if d_in <= 16:
        # VPU path: K=D_in is tiny, an MXU pass would still cost a full
        # push/pop in the serial layer chain.  Keeps observations in f32.
        x = x_ref[...]
        w1 = w1_ref[...]
        h = b1_ref[...] + x[:, 0:1] * w1[0:1, :]
        for k in range(1, d_in):
            h = h + x[:, k:k + 1] * w1[k:k + 1, :]
        h = jnp.maximum(h, 0.0).astype(bf16)
    else:
        h = jnp.maximum(
            jnp.dot(x_ref[...].astype(bf16), w1_ref[...].astype(bf16),
                    preferred_element_type=jnp.float32) + b1_ref[...],
            0.0).astype(bf16)

    # ---- fc2 / fc3 (bias + ReLU + bf16 cast fused) ----
    h = jnp.maximum(
        jnp.dot(h, w2_ref[...], preferred_element_type=jnp.float32) + b2_ref[...],
        0.0).astype(bf16)
    h = jnp.maximum(
        jnp.dot(h, w3_ref[...], preferred_element_type=jnp.float32) + b3_ref[...],
        0.0).astype(bf16)

    # ---- fc4 (lane-padded to 128 outputs, bf16 store) ----
    o_ref[...] = (
        jnp.dot(h, w4_ref[...], preferred_element_type=jnp.float32) + b4_ref[...]
    ).astype(o_ref.dtype)


def prepare_params(params):
    """One-time weight preparation (call OUTSIDE the training/inference step).

    * fc2/fc3/fc4 weights pre-cast to bf16 (MXU inputs).
    * fc4 weight/bias zero-padded to a 128-lane output so the kernel's store
      is a full unmasked vst.
    * fc1 weight/bias and all biases stay f32.
    """
    f32, bf16 = jnp.float32, jnp.bfloat16
    w4 = params["w4"]
    H, A = w4.shape
    a_pad = max(LANE, _round_up(A, LANE))
    w4p = jnp.zeros((H, a_pad), bf16).at[:, :A].set(w4.astype(bf16))
    b4p = jnp.zeros((1, a_pad), f32).at[:, :A].set(params["b4"].astype(f32))
    return {
        "w1": params["w1"].astype(f32), "b1": params["b1"].astype(f32),
        "w2": params["w2"].astype(bf16), "b2": params["b2"].astype(f32),
        "w3": params["w3"].astype(bf16), "b3": params["b3"].astype(f32),
        "w4": w4p, "b4": b4p,
    }


@functools.partial(jax.jit, static_argnames=("num_actions", "block_b"))
def qnetwork_forward(x, prepped, *, num_actions, block_b=1024):
    """x: [B, D_in] float32.  prepped: output of prepare_params.  Returns [B, A] f32."""
    B, D_in = x.shape
    w1, b1 = prepped["w1"], prepped["b1"]
    w2, b2 = prepped["w2"], prepped["b2"]
    w3, b3 = prepped["w3"], prepped["b3"]
    w4, b4 = prepped["w4"], prepped["b4"]
    H = w1.shape[1]
    A_pad = w4.shape[1]

    # Batch tiling:
    #  * B <= 128 : one tile (16-row granularity for bf16 sublane packing).
    #  * 128 < B <= 2*block_b : split in two so v7x's 2 TensorCores both work.
    #  * else : block_b-sized tiles (large tile amortizes per-step overhead).
    block_b = _round_up(block_b, 16)
    if B <= 128:
        bb = _round_up(B, 16)
    elif B <= 2 * block_b:
        bb = _round_up(pl.cdiv(B, 2), 16)
    else:
        bb = block_b
    B_pad = _round_up(B, bb)
    if B_pad != B:
        x = jnp.pad(x, ((0, B_pad - B), (0, 0)))

    # Weights/biases: constant-index full blocks (pipeliner DMAs them once).
    full = lambda shape: pl.BlockSpec(shape, lambda i: (0,) * len(shape))

    grid_spec = pltpu.PrefetchScalarGridSpec(
        num_scalar_prefetch=0,
        grid=(B_pad // bb,),
        in_specs=[
            pl.BlockSpec((bb, D_in), lambda i: (i, 0)),        # x tile (f32)
            full((D_in, H)),  full((1, H)),                    # fc1 (f32, VPU)
            full((H, H)),     full((1, H)),                    # fc2 (bf16 W)
            full((H, H)),     full((1, H)),                    # fc3 (bf16 W)
            full((H, A_pad)), full((1, A_pad)),                # fc4 (bf16 W, padded)
        ],
        out_specs=pl.BlockSpec((bb, A_pad), lambda i: (i, 0)),
    )

    flops = 2 * B_pad * (D_in * H + H * H + H * H + H * A_pad)
    bytes_accessed = (
        x.size * 4
        + (w1.size + b1.size + b2.size + b3.size + b4.size) * 4
        + (w2.size + w3.size + w4.size) * 2
        + B_pad * A_pad * 2)

    out = pl.pallas_call(
        _qnet_kernel,
        out_shape=jax.ShapeDtypeStruct((B_pad, A_pad), jnp.bfloat16),
        grid_spec=grid_spec,
        compiler_params=pltpu.CompilerParams(
            dimension_semantics=("parallel",)),
        cost_estimate=pl.CostEstimate(
            flops=flops, transcendentals=0, bytes_accessed=bytes_accessed),
    )(x, w1, b1, w2, b2, w3, b3, w4, b4)

    return out[:B, :num_actions].astype(jnp.float32)


def init_params(key, d_in=4, hidden=128, num_actions=2):
    """Deterministic init mirroring nn.Linear defaults (U(-1/sqrt(fan_in), +))."""
    dims = [(d_in, hidden), (hidden, hidden), (hidden, hidden), (hidden, num_actions)]
    params = {}
    for idx, (fin, fout) in enumerate(dims, start=1):
        key, kw, kb = jax.random.split(key, 3)
        bound = 1.0 / (fin ** 0.5)
        # stored as [in, out] == PyTorch weight.T
        params[f"w{idx}"] = jax.random.uniform(
            kw, (fin, fout), jnp.float32, minval=-bound, maxval=bound)
        params[f"b{idx}"] = jax.random.uniform(
            kb, (1, fout), jnp.float32, minval=-bound, maxval=bound)
    return params


def reference_forward_f32(x, params):
    h = jnp.maximum(x @ params["w1"] + params["b1"], 0.0)
    h = jnp.maximum(h @ params["w2"] + params["b2"], 0.0)
    h = jnp.maximum(h @ params["w3"] + params["b3"], 0.0)
    return h @ params["w4"] + params["b4"]


def reference_forward_mixed(x, params):
    """Mirrors the kernel's precision: f32 layer-1, bf16 MXU inputs for layers
    2-4 with f32 accumulation, bf16 inter-layer activations, bf16 final store."""
    bf = jnp.bfloat16
    h = jnp.maximum(x @ params["w1"] + params["b1"], 0.0).astype(bf)
    for i in (2, 3):
        h = jnp.maximum(
            jnp.dot(h, params[f"w{i}"].astype(bf),
                    preferred_element_type=jnp.float32) + params[f"b{i}"],
            0.0).astype(bf)
    y = jnp.dot(h, params["w4"].astype(bf),
                preferred_element_type=jnp.float32) + params["b4"]
    return y.astype(bf).astype(jnp.float32)


if __name__ == "__main__":
    key = jax.random.PRNGKey(0)
    kp, kx, kx2 = jax.random.split(key, 3)

    D_IN, HIDDEN, NUM_ACTIONS = 4, 128, 2
    params = init_params(kp, d_in=D_IN, hidden=HIDDEN, num_actions=NUM_ACTIONS)
    prepped = prepare_params(params)   # one-time: bf16 cast + fc4 lane padding

    # Small CartPole-style batch -> single grid step.
    x_small = jax.random.normal(kx, (8, D_IN), jnp.float32)
    out_small = jax.block_until_ready(
        qnetwork_forward(x_small, prepped, num_actions=NUM_ACTIONS))

    # Replay-buffer-style batch (not tile-divisible) -> padded, 2 grid steps
    # so both v7x TensorCores get a tile.
    x_big = jax.random.normal(kx2, (300, D_IN), jnp.float32)
    out_big = jax.block_until_ready(
        qnetwork_forward(x_big, prepped, num_actions=NUM_ACTIONS))

    for x, out in ((x_small, out_small), (x_big, out_big)):
        assert out.shape == (x.shape[0], NUM_ACTIONS), out.shape
        assert out.dtype == jnp.float32
        ref_mixed = reference_forward_mixed(x, params)
        ref_f32 = reference_forward_f32(x, params)
        assert jnp.allclose(out, ref_mixed, atol=1e-2, rtol=1e-2), \
            float(jnp.max(jnp.abs(out - ref_mixed)))
        assert jnp.allclose(out, ref_f32, atol=5e-2, rtol=5e-2), \
            float(jnp.max(jnp.abs(out - ref_f32)))

    print("KERNEL_OK")
</pallas_src>

<mosaic_0001>
module attributes {stable_mosaic.version = 11 : i64} {
  func.func @_qnet_kernel(%arg0: i32, %arg1: memref<16x4xf32, #tpu.memory_space<vmem>>, %arg2: memref<4x128xf32, #tpu.memory_space<vmem>>, %arg3: memref<1x128xf32, #tpu.memory_space<vmem>>, %arg4: memref<128x128xbf16, #tpu.memory_space<vmem>>, %arg5: memref<1x128xf32, #tpu.memory_space<vmem>>, %arg6: memref<128x128xbf16, #tpu.memory_space<vmem>>, %arg7: memref<1x128xf32, #tpu.memory_space<vmem>>, %arg8: memref<128x128xbf16, #tpu.memory_space<vmem>>, %arg9: memref<1x128xf32, #tpu.memory_space<vmem>>, %arg10: memref<16x128xbf16, #tpu.memory_space<vmem>>) attributes {dimension_semantics = [#tpu.dimension_semantics<parallel>], iteration_bounds = array<i64: 1>, scalar_prefetch = 0 : i64, scratch_operands = 0 : i64, tpu.core_type = #tpu.core_type<tc>, window_params = [{transform_indices = @transform_0, window_bounds = array<i64: 16, 4>}, {pipeline_mode = #tpu.pipeline_mode<synchronous>, transform_indices = @transform_1, window_bounds = array<i64: 4, 128>}, {pipeline_mode = #tpu.pipeline_mode<synchronous>, transform_indices = @transform_2, window_bounds = array<i64: 1, 128>}, {pipeline_mode = #tpu.pipeline_mode<synchronous>, transform_indices = @transform_3, window_bounds = array<i64: 128, 128>}, {pipeline_mode = #tpu.pipeline_mode<synchronous>, transform_indices = @transform_4, window_bounds = array<i64: 1, 128>}, {pipeline_mode = #tpu.pipeline_mode<synchronous>, transform_indices = @transform_5, window_bounds = array<i64: 128, 128>}, {pipeline_mode = #tpu.pipeline_mode<synchronous>, transform_indices = @transform_6, window_bounds = array<i64: 1, 128>}, {pipeline_mode = #tpu.pipeline_mode<synchronous>, transform_indices = @transform_7, window_bounds = array<i64: 128, 128>}, {pipeline_mode = #tpu.pipeline_mode<synchronous>, transform_indices = @transform_8, window_bounds = array<i64: 1, 128>}, {transform_indices = @transform_9, window_bounds = array<i64: 16, 128>}]} {
    %c0 = arith.constant 0 : index
    %c0_0 = arith.constant 0 : index
    %0 = vector.load %arg1[%c0, %c0_0] : memref<16x4xf32, #tpu.memory_space<vmem>>, vector<16x4xf32>
    %c0_1 = arith.constant 0 : index
    %c0_2 = arith.constant 0 : index
    %1 = vector.load %arg2[%c0_1, %c0_2] : memref<4x128xf32, #tpu.memory_space<vmem>>, vector<4x128xf32>
    %c0_3 = arith.constant 0 : index
    %c0_4 = arith.constant 0 : index
    %2 = vector.load %arg3[%c0_3, %c0_4] : memref<1x128xf32, #tpu.memory_space<vmem>>, vector<1x128xf32>
    %3 = vector.extract_strided_slice %0 {offsets = [0, 0], sizes = [16, 1], strides = [1, 1]} : vector<16x4xf32> to vector<16x1xf32>
    %4 = vector.extract_strided_slice %1 {offsets = [0, 0], sizes = [1, 128], strides = [1, 1]} : vector<4x128xf32> to vector<1x128xf32>
    %5 = vector.broadcast %3 : vector<16x1xf32> to vector<16x128xf32>
    %6 = vector.broadcast %4 : vector<1x128xf32> to vector<16x128xf32>
    %7 = arith.mulf %5, %6 : vector<16x128xf32>
    %8 = vector.broadcast %2 : vector<1x128xf32> to vector<16x128xf32>
    %9 = arith.addf %8, %7 : vector<16x128xf32>
    %10 = vector.extract_strided_slice %0 {offsets = [0, 1], sizes = [16, 1], strides = [1, 1]} : vector<16x4xf32> to vector<16x1xf32>
    %11 = vector.extract_strided_slice %1 {offsets = [1, 0], sizes = [1, 128], strides = [1, 1]} : vector<4x128xf32> to vector<1x128xf32>
    %12 = vector.broadcast %10 : vector<16x1xf32> to vector<16x128xf32>
    %13 = vector.broadcast %11 : vector<1x128xf32> to vector<16x128xf32>
    %14 = arith.mulf %12, %13 : vector<16x128xf32>
    %15 = arith.addf %9, %14 : vector<16x128xf32>
    %16 = vector.extract_strided_slice %0 {offsets = [0, 2], sizes = [16, 1], strides = [1, 1]} : vector<16x4xf32> to vector<16x1xf32>
    %17 = vector.extract_strided_slice %1 {offsets = [2, 0], sizes = [1, 128], strides = [1, 1]} : vector<4x128xf32> to vector<1x128xf32>
    %18 = vector.broadcast %16 : vector<16x1xf32> to vector<16x128xf32>
    %19 = vector.broadcast %17 : vector<1x128xf32> to vector<16x128xf32>
    %20 = arith.mulf %18, %19 : vector<16x128xf32>
    %21 = arith.addf %15, %20 : vector<16x128xf32>
    %22 = vector.extract_strided_slice %0 {offsets = [0, 3], sizes = [16, 1], strides = [1, 1]} : vector<16x4xf32> to vector<16x1xf32>
    %23 = vector.extract_strided_slice %1 {offsets = [3, 0], sizes = [1, 128], strides = [1, 1]} : vector<4x128xf32> to vector<1x128xf32>
    %24 = vector.broadcast %22 : vector<16x1xf32> to vector<16x128xf32>
    %25 = vector.broadcast %23 : vector<1x128xf32> to vector<16x128xf32>
    %26 = arith.mulf %24, %25 : vector<16x128xf32>
    %27 = arith.addf %21, %26 : vector<16x128xf32>
    %cst = arith.constant 0.000000e+00 : f32
    %28 = vector.broadcast %cst : f32 to vector<16x128xf32>
    %29 = arith.maximumf %27, %28 : vector<16x128xf32>
    %30 = arith.truncf %29 : vector<16x128xf32> to vector<16x128xbf16>
    %c0_5 = arith.constant 0 : index
    %c0_6 = arith.constant 0 : index
    %31 = vector.load %arg4[%c0_5, %c0_6] : memref<128x128xbf16, #tpu.memory_space<vmem>>, vector<128x128xbf16>
    %cst_7 = arith.constant dense<0.000000e+00> : vector<16x128xf32>
    %32 = tpu.matmul %30, %31, %cst_7 {dimension_numbers = #tpu.dot_dimension_numbers<[1], [0], [0], [1], [0, 0, 1, 1], [], []>} : vector<16x128xbf16>, vector<128x128xbf16>, vector<16x128xf32> -> vector<16x128xf32>
    %c0_8 = arith.constant 0 : index
    %c0_9 = arith.constant 0 : index
    %33 = vector.load %arg5[%c0_8, %c0_9] : memref<1x128xf32, #tpu.memory_space<vmem>>, vector<1x128xf32>
    %34 = vector.broadcast %33 : vector<1x128xf32> to vector<16x128xf32>
    %35 = arith.addf %32, %34 : vector<16x128xf32>
    %cst_10 = arith.constant 0.000000e+00 : f32
    %36 = vector.broadcast %cst_10 : f32 to vector<16x128xf32>
    %37 = arith.maximumf %35, %36 : vector<16x128xf32>
    %38 = arith.truncf %37 : vector<16x128xf32> to vector<16x128xbf16>
    %c0_11 = arith.constant 0 : index
    %c0_12 = arith.constant 0 : index
    %39 = vector.load %arg6[%c0_11, %c0_12] : memref<128x128xbf16, #tpu.memory_space<vmem>>, vector<128x128xbf16>
    %cst_13 = arith.constant dense<0.000000e+00> : vector<16x128xf32>
    %40 = tpu.matmul %38, %39, %cst_13 {dimension_numbers = #tpu.dot_dimension_numbers<[1], [0], [0], [1], [0, 0, 1, 1], [], []>} : vector<16x128xbf16>, vector<128x128xbf16>, vector<16x128xf32> -> vector<16x128xf32>
    %c0_14 = arith.constant 0 : index
    %c0_15 = arith.constant 0 : index
    %41 = vector.load %arg7[%c0_14, %c0_15] : memref<1x128xf32, #tpu.memory_space<vmem>>, vector<1x128xf32>
    %42 = vector.broadcast %41 : vector<1x128xf32> to vector<16x128xf32>
    %43 = arith.addf %40, %42 : vector<16x128xf32>
    %cst_16 = arith.constant 0.000000e+00 : f32
    %44 = vector.broadcast %cst_16 : f32 to vector<16x128xf32>
    %45 = arith.maximumf %43, %44 : vector<16x128xf32>
    %46 = arith.truncf %45 : vector<16x128xf32> to vector<16x128xbf16>
    %c0_17 = arith.constant 0 : index
    %c0_18 = arith.constant 0 : index
    %47 = vector.load %arg8[%c0_17, %c0_18] : memref<128x128xbf16, #tpu.memory_space<vmem>>, vector<128x128xbf16>
    %cst_19 = arith.constant dense<0.000000e+00> : vector<16x128xf32>
    %48 = tpu.matmul %46, %47, %cst_19 {dimension_numbers = #tpu.dot_dimension_numbers<[1], [0], [0], [1], [0, 0, 1, 1], [], []>} : vector<16x128xbf16>, vector<128x128xbf16>, vector<16x128xf32> -> vector<16x128xf32>
    %c0_20 = arith.constant 0 : index
    %c0_21 = arith.constant 0 : index
    %49 = vector.load %arg9[%c0_20, %c0_21] : memref<1x128xf32, #tpu.memory_space<vmem>>, vector<1x128xf32>
    %50 = vector.broadcast %49 : vector<1x128xf32> to vector<16x128xf32>
    %51 = arith.addf %48, %50 : vector<16x128xf32>
    %52 = arith.truncf %51 : vector<16x128xf32> to vector<16x128xbf16>
    %c0_22 = arith.constant 0 : index
    %c0_23 = arith.constant 0 : index
    %53 = vector.load %arg10[%c0_22, %c0_23] : memref<16x128xbf16, #tpu.memory_space<vmem>>, vector<16x128xbf16>
    tpu.vector_store %arg10[%c0_22, %c0_23], %52 {strides = array<i32>} : memref<16x128xbf16, #tpu.memory_space<vmem>>, vector<16x128xbf16>,
    return
  }
  func.func @transform_0(%arg0: i32) -> (i32, i32) {
    %c0_i32 = arith.constant 0 : i32
    %c0_i32_0 = arith.constant 0 : i32
    return %arg0, %c0_i32 : i32, i32
  }
  func.func @transform_1(%arg0: i32) -> (i32, i32) {
    %c0_i32 = arith.constant 0 : i32
    %c0_i32_0 = arith.constant 0 : i32
    %c0_i32_1 = arith.constant 0 : i32
    return %c0_i32, %c0_i32_0 : i32, i32
  }
  func.func @transform_2(%arg0: i32) -> (i32, i32) {
    %c0_i32 = arith.constant 0 : i32
    %c0_i32_0 = arith.constant 0 : i32
    %c0_i32_1 = arith.constant 0 : i32
    return %c0_i32, %c0_i32_0 : i32, i32
  }
  func.func @transform_3(%arg0: i32) -> (i32, i32) {
    %c0_i32 = arith.constant 0 : i32
    %c0_i32_0 = arith.constant 0 : i32
    %c0_i32_1 = arith.constant 0 : i32
    return %c0_i32, %c0_i32_0 : i32, i32
  }
  func.func @transform_4(%arg0: i32) -> (i32, i32) {
    %c0_i32 = arith.constant 0 : i32
    %c0_i32_0 = arith.constant 0 : i32
    %c0_i32_1 = arith.constant 0 : i32
    return %c0_i32, %c0_i32_0 : i32, i32
  }
  func.func @transform_5(%arg0: i32) -> (i32, i32) {
    %c0_i32 = arith.constant 0 : i32
    %c0_i32_0 = arith.constant 0 : i32
    %c0_i32_1 = arith.constant 0 : i32
    return %c0_i32, %c0_i32_0 : i32, i32
  }
  func.func @transform_6(%arg0: i32) -> (i32, i32) {
    %c0_i32 = arith.constant 0 : i32
    %c0_i32_0 = arith.constant 0 : i32
    %c0_i32_1 = arith.constant 0 : i32
    return %c0_i32, %c0_i32_0 : i32, i32
  }
  func.func @transform_7(%arg0: i32) -> (i32, i32) {
    %c0_i32 = arith.constant 0 : i32
    %c0_i32_0 = arith.constant 0 : i32
    %c0_i32_1 = arith.constant 0 : i32
    return %c0_i32, %c0_i32_0 : i32, i32
  }
  func.func @transform_8(%arg0: i32) -> (i32, i32) {
    %c0_i32 = arith.constant 0 : i32
    %c0_i32_0 = arith.constant 0 : i32
    %c0_i32_1 = arith.constant 0 : i32
    return %c0_i32, %c0_i32_0 : i32, i32
  }
  func.func @transform_9(%arg0: i32) -> (i32, i32) {
    %c0_i32 = arith.constant 0 : i32
    %c0_i32_0 = arith.constant 0 : i32
    return %arg0, %c0_i32 : i32, i32
  }
}

</mosaic_0001>

<llo_original>
// kernel: qnetwork_forward.1
$region0: #{qnetwork_forward.1}
  #allocation0 [shape = 'u32[]', space=smem, size = 0x4, offset = 0x4, fixed_abs, tag = 'smem constant byte address 0x4 - core index']
  #allocation1 [shape = 'u32[144,128]{1,0:T(1,128)}', space=vmem, size = 0x12000, scoped, tag = 'internal scratch']
  %s0 = inlined_call_operand.vmem [shape: f32[16,4], index: 0, kind: input, shape index: {}]
  %s1 = inlined_call_operand.vmem [shape: f32[4,128], index: 1, kind: input, shape index: {}]
  %s2 = inlined_call_operand.vmem [shape: f32[1,128], index: 2, kind: input, shape index: {}]
  %s3 = inlined_call_operand.hbm [shape: bf16[128,128], index: 3, kind: input, shape index: {}]
  %s4 = inlined_call_operand.vmem [shape: f32[1,128], index: 4, kind: input, shape index: {}]
  %s5 = inlined_call_operand.hbm [shape: bf16[128,128], index: 5, kind: input, shape index: {}]
  %s6 = inlined_call_operand.vmem [shape: f32[1,128], index: 6, kind: input, shape index: {}]
  %s7 = inlined_call_operand.hbm [shape: bf16[128,128], index: 7, kind: input, shape index: {}]
  %s8 = inlined_call_operand.vmem [shape: f32[1,128], index: 8, kind: input, shape index: {}]
  %s9 = inlined_call_operand.vmem [shape: bf16[16,128], index: 9, kind: output, shape index: {}]
  %s10 = sld [smem:[#allocation0]]
  $region58: #{qnetwork_forward.1} parent=0
    _
  %s12 = ssub.s32 1, %s10
  %s13 = scalar_select 0, %s12, %s10
  $region1: #{qnetwork_forward.1} parent=0
    #allocation2 [shape = 'u8[32768]{0}', space=vmem, size = 0x8000, scoped, tag = 'input window, operand 3, single buffered']
    #allocation3 [shape = 's32[1]{0}', space=sflag, size = 0x4, scoped, tag = 'scoped memory for qnetwork_forward.1']
    #allocation4 [shape = 'u8[32768]{0}', space=vmem, size = 0x8000, scoped, tag = 'input window, operand 5, single buffered']
    #allocation5 [shape = 's32[1]{0}', space=sflag, size = 0x4, scoped, tag = 'scoped memory for qnetwork_forward.1']
    #allocation6 [shape = 'u8[32768]{0}', space=vmem, size = 0x8000, scoped, tag = 'input window, operand 7, single buffered']
    %14 = vsyncpa [#allocation3], 0
    %15 = vsyncpa [#allocation5], 0
    // Predicated region
    $region2: #{qnetwork_forward.1} parent=1 // pred_check
      _
    $region3: #{qnetwork_forward.1} parent=1 // pred_check_branch
      %17 = sbr.rel (0) target = $region5
    $region4: #{qnetwork_forward.1} parent=1 // pred_region
      _
    $region5: #{qnetwork_forward.1} parent=1 // pred_fallthru
      _
    // Predicated region
    $region6: #{qnetwork_forward.1} parent=1 // pred_check
      _
    $region7: #{qnetwork_forward.1} parent=1 // pred_check_branch
      %19 = sbr.rel (0) target = $region9
    $region8: #{qnetwork_forward.1} parent=1 // pred_region
      _
    $region9: #{qnetwork_forward.1} parent=1 // pred_fallthru
      _
    // Predicated region
    $region10: #{qnetwork_forward.1} parent=1 // pred_check
      _
    $region11: #{qnetwork_forward.1} parent=1 // pred_check_branch
      %21 = sbr.rel (0) target = $region13
    $region12: #{qnetwork_forward.1} parent=1 // pred_region
      _
    $region13: #{qnetwork_forward.1} parent=1 // pred_fallthru
      _
    // Predicated region
    $region14: #{qnetwork_forward.1} parent=1 // pred_check
      _
    $region15: #{qnetwork_forward.1} parent=1 // pred_check_branch
      %23 = sbr.rel (0) target = $region17
    $region16: #{qnetwork_forward.1} parent=1 // pred_region
      %s25 = ssub.s32 1024, 1024
      %26 = vsyncadd [#allocation3], %s25
      %s27 = sshll.u32 [#allocation2], 4
      %s28 = int_to_ptr.vmem [resolvable:$true] %s27
      %33 = dma.hbm_to_vmem [thread:$0]  %s3, 1024, %s28, [#allocation3], 64, 64, 4
    $region17: #{qnetwork_forward.1} parent=1 // pred_fallthru
      _
    // Predicated region
    $region18: #{qnetwork_forward.1} parent=1 // pred_check
      _
    $region19: #{qnetwork_forward.1} parent=1 // pred_check_branch
      %35 = sbr.rel (0) target = $region21
    $region20: #{qnetwork_forward.1} parent=1 // pred_region
      _
    $region21: #{qnetwork_forward.1} parent=1 // pred_fallthru
      _
    // Predicated region
    $region22: #{qnetwork_forward.1} parent=1 // pred_check
      _
    $region23: #{qnetwork_forward.1} parent=1 // pred_check_branch
      %37 = sbr.rel (0) target = $region25
    $region24: #{qnetwork_forward.1} parent=1 // pred_region
      %s39 = ssub.s32 1024, 1024
      %40 = vsyncadd [#allocation5], %s39
      %s41 = sshll.u32 [#allocation4], 4
      %s42 = int_to_ptr.vmem [resolvable:$true] %s41
      %47 = dma.hbm_to_vmem [thread:$0]  %s5, 1024, %s42, [#allocation5], 64, 64, 4
    $region25: #{qnetwork_forward.1} parent=1 // pred_fallthru
      _
    // Predicated region
    $region26: #{qnetwork_forward.1} parent=1 // pred_check
      _
    $region27: #{qnetwork_forward.1} parent=1 // pred_check_branch
      %49 = sbr.rel (0) target = $region29
    $region28: #{qnetwork_forward.1} parent=1 // pred_region
      _
    $region29: #{qnetwork_forward.1} parent=1 // pred_fallthru
      _
    // Predicated region
    $region30: #{qnetwork_forward.1} parent=1 // pred_check
      _
    $region31: #{qnetwork_forward.1} parent=1 // pred_check_branch
      %51 = sbr.rel (0) target = $region33
    $region32: #{qnetwork_forward.1} parent=1 // pred_region
      %s53 = ssub.s32 1024, 1024
      %54 = vsyncadd [#allocation5], %s53
      %s55 = sshll.u32 [#allocation6], 4
      %s56 = int_to_ptr.vmem [resolvable:$true] %s55
      %61 = dma.hbm_to_vmem [thread:$0]  %s7, 1024, %s56, [#allocation5], 64, 64, 4
    $region33: #{qnetwork_forward.1} parent=1 // pred_fallthru
      _
    // Predicated region
    $region34: #{qnetwork_forward.1} parent=1 // pred_check
      _
    $region35: #{qnetwork_forward.1} parent=1 // pred_check_branch
      %63 = sbr.rel (0) target = $region37
    $region36: #{qnetwork_forward.1} parent=1 // pred_region
      _
    $region37: #{qnetwork_forward.1} parent=1 // pred_fallthru
      _
    // Predicated region
    $region38: #{qnetwork_forward.1} parent=1 // pred_check
      _
    $region39: #{qnetwork_forward.1} parent=1 // pred_check_branch
      %65 = sbr.rel (0) target = $region41
    $region40: #{qnetwork_forward.1} parent=1 // pred_region
      %66 = dma.done [#allocation3], 1024
    $region41: #{qnetwork_forward.1} parent=1 // pred_fallthru
      _
    // Predicated region
    $region42: #{qnetwork_forward.1} parent=1 // pred_check
      _
    $region43: #{qnetwork_forward.1} parent=1 // pred_check_branch
      %68 = sbr.rel (0) target = $region45
    $region44: #{qnetwork_forward.1} parent=1 // pred_region
      %69 = dma.done [#allocation5], 1024
    $region45: #{qnetwork_forward.1} parent=1 // pred_fallthru
      _
    // Predicated region
    $region46: #{qnetwork_forward.1} parent=1 // pred_check
      _
    $region47: #{qnetwork_forward.1} parent=1 // pred_check_branch
      %71 = sbr.rel (0) target = $region49
    $region48: #{qnetwork_forward.1} parent=1 // pred_region
      %72 = dma.done [#allocation5], 1024
    $region49: #{qnetwork_forward.1} parent=1 // pred_fallthru
      _
    %v74 = vld [vmem:[%s0] sm:$0xff]
    %v75 = vld [vmem:[%s0 + $0x8] sm:$0xff]
    %v76 = vld [vmem:[%s1] sm:$0xf]
    %v77 = vld [vmem:[%s2] sm:$0x1]
    %79 = vset.pattern.permute.xlu0 0
    %80 = vperm.xlu0 %79, %v74
    %v81 = vpop.permute.xlu0 %80
    %84 = vset.pattern.permute.xlu0 0
    %85 = vperm.xlu0 %84, %v75
    %v86 = vpop.permute.xlu0 %85
    %v88 = vlaneseq
    %v89 = vshrl.u32 %v88, 7
    %v90 = vsub.s32 0, %v89
    %v91 = vrot.slane %v76, %v90
    %v92 = vmul.f32 %v81, %v91
    %v93 = vmul.f32 %v86, %v91
    %v95 = vlaneseq
    %v96 = vshrl.u32 %v95, 7
    %v97 = vsub.s32 0, %v96
    %v98 = vrot.slane %v77, %v97
    %v100 = vadd.f32 %v98, %v92
    %v101 = vadd.f32 %v98, %v93
    %102 = vset.pattern.permute.xlu0 1
    %103 = vperm.xlu0 %102, %v74
    %v104 = vpop.permute.xlu0 %103
    %106 = vset.pattern.permute.xlu0 1
    %107 = vperm.xlu0 %106, %v75
    %v108 = vpop.permute.xlu0 %107
    %v110 = vlaneseq
    %v111 = vshrl.u32 %v110, 7
    %v112 = vsub.s32 1, %v111
    %v113 = vrot.slane %v76, %v112
    %v114 = vmul.f32 %v104, %v113
    %v115 = vmul.f32 %v108, %v113
    %v116 = vadd.f32 %v100, %v114
    %v117 = vadd.f32 %v101, %v115
    %118 = vset.pattern.permute.xlu0 2
    %119 = vperm.xlu0 %118, %v74
    %v120 = vpop.permute.xlu0 %119
    %122 = vset.pattern.permute.xlu0 2
    %123 = vperm.xlu0 %122, %v75
    %v124 = vpop.permute.xlu0 %123
    %v126 = vlaneseq
    %v127 = vshrl.u32 %v126, 7
    %v128 = vsub.s32 2, %v127
    %v129 = vrot.slane %v76, %v128
    %v130 = vmul.f32 %v120, %v129
    %v131 = vmul.f32 %v124, %v129
    %v132 = vadd.f32 %v116, %v130
    %v133 = vadd.f32 %v117, %v131
    %134 = vset.pattern.permute.xlu0 3
    %135 = vperm.xlu0 %134, %v74
    %v136 = vpop.permute.xlu0 %135
    %138 = vset.pattern.permute.xlu0 3
    %139 = vperm.xlu0 %138, %v75
    %v140 = vpop.permute.xlu0 %139
    %v142 = vlaneseq
    %v143 = vshrl.u32 %v142, 7
    %v144 = vsub.s32 3, %v143
    %v145 = vrot.slane %v76, %v144
    %v146 = vmul.f32 %v136, %v145
    %v147 = vmul.f32 %v140, %v145
    %v148 = vadd.f32 %v132, %v146
    %v149 = vadd.f32 %v133, %v147
    %v150 = vmax.f32 %v148, 0.0
    %v151 = vmax.f32 %v149, 0.0
    %v152 = vpack.c.bf16 %v151, %v150
    %v153 = vld [vmem:[#allocation2] sm:$0xf]
    %v154 = vld [vmem:[#allocation2 + $0x4] sm:$0xf]
    %v155 = vld [vmem:[#allocation2 + $0x8] sm:$0xf]
    %v156 = vld [vmem:[#allocation2 + $0xc] sm:$0xf]
    %v157 = vld [vmem:[#allocation2 + $0x10] sm:$0xf]
    %v158 = vld [vmem:[#allocation2 + $0x14] sm:$0xf]
    %v159 = vld [vmem:[#allocation2 + $0x18] sm:$0xf]
    %v160 = vld [vmem:[#allocation2 + $0x1c] sm:$0xf]
    %v161 = vld [vmem:[#allocation2 + $0x20] sm:$0xf]
    %v162 = vld [vmem:[#allocation2 + $0x24] sm:$0xf]
    %v163 = vld [vmem:[#allocation2 + $0x28] sm:$0xf]
    %v164 = vld [vmem:[#allocation2 + $0x2c] sm:$0xf]
    %v165 = vld [vmem:[#allocation2 + $0x30] sm:$0xf]
    %v166 = vld [vmem:[#allocation2 + $0x34] sm:$0xf]
    %v167 = vld [vmem:[#allocation2 + $0x38] sm:$0xf]
    %v168 = vld [vmem:[#allocation2 + $0x3c] sm:$0xf]
    %v169 = vld [vmem:[%s4] sm:$0x1]
    %v171 = vlaneseq
    %v172 = vshrl.u32 %v171, 7
    %v173 = vsub.s32 0, %v172
    %v174 = vrot.slane %v169, %v173
    %v192 = vunpack.c.l.b16 %v153
    %v193 = vunpack.c.l.b16 %v154
    %v194 = vunpack.c.l.b16 %v155
    %v195 = vunpack.c.l.b16 %v156
    %v196 = vunpack.c.l.b16 %v157
    %v197 = vunpack.c.l.b16 %v158
    %v198 = vunpack.c.l.b16 %v159
    %v199 = vunpack.c.l.b16 %v160
    %v200 = vunpack.c.l.b16 %v161
    %v201 = vunpack.c.l.b16 %v162
    %v202 = vunpack.c.l.b16 %v163
    %v203 = vunpack.c.l.b16 %v164
    %v204 = vunpack.c.l.b16 %v165
    %v205 = vunpack.c.l.b16 %v166
    %v206 = vunpack.c.l.b16 %v167
    %v207 = vunpack.c.l.b16 %v168
    %v208 = vpack.c.b16 %v193, %v192
    %v209 = vpack.c.b16 %v195, %v194
    %v210 = vpack.c.b16 %v197, %v196
    %v211 = vpack.c.b16 %v199, %v198
    %v212 = vpack.c.b16 %v201, %v200
    %v213 = vpack.c.b16 %v203, %v202
    %v214 = vpack.c.b16 %v205, %v204
    %v215 = vpack.c.b16 %v207, %v206
    %224 = vmatprep.subr.bf16.mxu0 0
    %225 = vmatpush1.bf16.msra.mxu0 %v215
    %226 = vmatprep.subr.bf16.mxu0 0
    %227 = vmatpush1.bf16.msra.mxu0 %v214
    %228 = vmatprep.subr.bf16.mxu0 0
    %229 = vmatpush1.bf16.msra.mxu0 %v213
    %230 = vmatprep.subr.bf16.mxu0 0
    %231 = vmatpush1.bf16.msra.mxu0 %v212
    %232 = vmatprep.subr.bf16.mxu0 0
    %233 = vmatpush1.bf16.msra.mxu0 %v211
    %234 = vmatprep.subr.bf16.mxu0 0
    %235 = vmatpush1.bf16.msra.mxu0 %v210
    %236 = vmatprep.subr.bf16.mxu0 0
    %237 = vmatpush1.bf16.msra.mxu0 %v209
    %238 = vmatprep.subr.bf16.mxu0 0
    %239 = vmatpush1.bf16.msra.mxu0 %v208
    %240 = vmatprep.subr.bf16.mxu0 0
    %241 = vmatpush2.bf16.msra.mxu0 0
    %242 = vmatprep.subr.bf16.mxu0 0
    %243 = vmatpush2.bf16.msra.mxu0 0
    %244 = vmatprep.subr.bf16.mxu0 0
    %245 = vmatpush2.bf16.msra.mxu0 0
    %246 = vmatprep.subr.bf16.mxu0 0
    %247 = vmatpush2.bf16.msra.mxu0 0
    %248 = vmatprep.subr.bf16.mxu0 0
    %249 = vmatpush2.bf16.msra.mxu0 0
    %250 = vmatprep.subr.bf16.mxu0 0
    %251 = vmatpush2.bf16.msra.mxu0 0
    %252 = vmatprep.subr.bf16.mxu0 0
    %253 = vmatpush2.bf16.msra.mxu0 0
    %254 = vmatprep.subr.bf16.mxu0 0
    %255 = vmatpush2.bf16.msra.mxu0 0
    %256 = vmatprep.mubr.bf16.mxu0 0
    %257 = vmatmul.mubr.bf16.gmra.mxu0 %v152
    %v258 = vpop.f32.mrf.mxu0
    %v259 = vadd.f32 %v174, %v258
    %v260 = vpop.f32.mrf.mxu0
    %v261 = vpop.f32.mrf.mxu0
    %v262 = vadd.f32 %v174, %v261
    %v263 = vpop.f32.mrf.mxu0
    %264 = vdwg.mxu0
    %v265 = vmax.f32 %v259, 0.0
    %v266 = vmax.f32 %v262, 0.0
    %v267 = vpack.c.bf16 %v266, %v265
    %v268 = vld [vmem:[#allocation4] sm:$0xf]
    %v269 = vld [vmem:[#allocation4 + $0x4] sm:$0xf]
    %v270 = vld [vmem:[#allocation4 + $0x8] sm:$0xf]
    %v271 = vld [vmem:[#allocation4 + $0xc] sm:$0xf]
    %v272 = vld [vmem:[#allocation4 + $0x10] sm:$0xf]
    %v273 = vld [vmem:[#allocation4 + $0x14] sm:$0xf]
    %v274 = vld [vmem:[#allocation4 + $0x18] sm:$0xf]
    %v275 = vld [vmem:[#allocation4 + $0x1c] sm:$0xf]
    %v276 = vld [vmem:[#allocation4 + $0x20] sm:$0xf]
    %v277 = vld [vmem:[#allocation4 + $0x24] sm:$0xf]
    %v278 = vld [vmem:[#allocation4 + $0x28] sm:$0xf]
    %v279 = vld [vmem:[#allocation4 + $0x2c] sm:$0xf]
    %v280 = vld [vmem:[#allocation4 + $0x30] sm:$0xf]
    %v281 = vld [vmem:[#allocation4 + $0x34] sm:$0xf]
    %v282 = vld [vmem:[#allocation4 + $0x38] sm:$0xf]
    %v283 = vld [vmem:[#allocation4 + $0x3c] sm:$0xf]
    %v284 = vld [vmem:[%s6] sm:$0x1]
    %v286 = vlaneseq
    %v287 = vshrl.u32 %v286, 7
    %v288 = vsub.s32 0, %v287
    %v289 = vrot.slane %v284, %v288
    %v307 = vunpack.c.l.b16 %v268
    %v308 = vunpack.c.l.b16 %v269
    %v309 = vunpack.c.l.b16 %v270
    %v310 = vunpack.c.l.b16 %v271
    %v311 = vunpack.c.l.b16 %v272
    %v312 = vunpack.c.l.b16 %v273
    %v313 = vunpack.c.l.b16 %v274
    %v314 = vunpack.c.l.b16 %v275
    %v315 = vunpack.c.l.b16 %v276
    %v316 = vunpack.c.l.b16 %v277
    %v317 = vunpack.c.l.b16 %v278
    %v318 = vunpack.c.l.b16 %v279
    %v319 = vunpack.c.l.b16 %v280
    %v320 = vunpack.c.l.b16 %v281
    %v321 = vunpack.c.l.b16 %v282
    %v322 = vunpack.c.l.b16 %v283
    %v323 = vpack.c.b16 %v308, %v307
    %v324 = vpack.c.b16 %v310, %v309
    %v325 = vpack.c.b16 %v312, %v311
    %v326 = vpack.c.b16 %v314, %v313
    %v327 = vpack.c.b16 %v316, %v315
    %v328 = vpack.c.b16 %v318, %v317
    %v329 = vpack.c.b16 %v320, %v319
    %v330 = vpack.c.b16 %v322, %v321
    %339 = vmatprep.subr.bf16.mxu0 0
    %340 = vmatpush1.bf16.msra.mxu0 %v330
    %341 = vmatprep.subr.bf16.mxu0 0
    %342 = vmatpush1.bf16.msra.mxu0 %v329
    %343 = vmatprep.subr.bf16.mxu0 0
    %344 = vmatpush1.bf16.msra.mxu0 %v328
    %345 = vmatprep.subr.bf16.mxu0 0
    %346 = vmatpush1.bf16.msra.mxu0 %v327
    %347 = vmatprep.subr.bf16.mxu0 0
    %348 = vmatpush1.bf16.msra.mxu0 %v326
    %349 = vmatprep.subr.bf16.mxu0 0
    %350 = vmatpush1.bf16.msra.mxu0 %v325
    %351 = vmatprep.subr.bf16.mxu0 0
    %352 = vmatpush1.bf16.msra.mxu0 %v324
    %353 = vmatprep.subr.bf16.mxu0 0
    %354 = vmatpush1.bf16.msra.mxu0 %v323
    %355 = vmatprep.subr.bf16.mxu0 0
    %356 = vmatpush2.bf16.msra.mxu0 0
    %357 = vmatprep.subr.bf16.mxu0 0
    %358 = vmatpush2.bf16.msra.mxu0 0
    %359 = vmatprep.subr.bf16.mxu0 0
    %360 = vmatpush2.bf16.msra.mxu0 0
    %361 = vmatprep.subr.bf16.mxu0 0
    %362 = vmatpush2.bf16.msra.mxu0 0
    %363 = vmatprep.subr.bf16.mxu0 0
    %364 = vmatpush2.bf16.msra.mxu0 0
    %365 = vmatprep.subr.bf16.mxu0 0
    %366 = vmatpush2.bf16.msra.mxu0 0
    %367 = vmatprep.subr.bf16.mxu0 0
    %368 = vmatpush2.bf16.msra.mxu0 0
    %369 = vmatprep.subr.bf16.mxu0 0
    %370 = vmatpush2.bf16.msra.mxu0 0
    %371 = vmatprep.mubr.bf16.mxu0 0
    %372 = vmatmul.mubr.bf16.gmra.mxu0 %v267
    %v373 = vpop.f32.mrf.mxu0
    %v374 = vadd.f32 %v289, %v373
    %v375 = vpop.f32.mrf.mxu0
    %v376 = vpop.f32.mrf.mxu0
    %v377 = vadd.f32 %v289, %v376
    %v378 = vpop.f32.mrf.mxu0
    %379 = vdwg.mxu0
    %v380 = vmax.f32 %v374, 0.0
    %v381 = vmax.f32 %v377, 0.0
    %v382 = vpack.c.bf16 %v381, %v380
    %v383 = vld [vmem:[#allocation6] sm:$0xf]
    %v384 = vld [vmem:[#allocation6 + $0x4] sm:$0xf]
    %v385 = vld [vmem:[#allocation6 + $0x8] sm:$0xf]
    %v386 = vld [vmem:[#allocation6 + $0xc] sm:$0xf]
    %v387 = vld [vmem:[#allocation6 + $0x10] sm:$0xf]
    %v388 = vld [vmem:[#allocation6 + $0x14] sm:$0xf]
    %v389 = vld [vmem:[#allocation6 + $0x18] sm:$0xf]
    %v390 = vld [vmem:[#allocation6 + $0x1c] sm:$0xf]
    %v391 = vld [vmem:[#allocation6 + $0x20] sm:$0xf]
    %v392 = vld [vmem:[#allocation6 + $0x24] sm:$0xf]
    %v393 = vld [vmem:[#allocation6 + $0x28] sm:$0xf]
    %v394 = vld [vmem:[#allocation6 + $0x2c] sm:$0xf]
    %v395 = vld [vmem:[#allocation6 + $0x30] sm:$0xf]
    %v396 = vld [vmem:[#allocation6 + $0x34] sm:$0xf]
    %v397 = vld [vmem:[#allocation6 + $0x38] sm:$0xf]
    %v398 = vld [vmem:[#allocation6 + $0x3c] sm:$0xf]
    %v399 = vld [vmem:[%s8] sm:$0x1]
    %v401 = vlaneseq
    %v402 = vshrl.u32 %v401, 7
    %v403 = vsub.s32 0, %v402
    %v404 = vrot.slane %v399, %v403
    %v422 = vunpack.c.l.b16 %v383
    %v423 = vunpack.c.l.b16 %v384
    %v424 = vunpack.c.l.b16 %v385
    %v425 = vunpack.c.l.b16 %v386
    %v426 = vunpack.c.l.b16 %v387
    %v427 = vunpack.c.l.b16 %v388
    %v428 = vunpack.c.l.b16 %v389
    %v429 = vunpack.c.l.b16 %v390
    %v430 = vunpack.c.l.b16 %v391
    %v431 = vunpack.c.l.b16 %v392
    %v432 = vunpack.c.l.b16 %v393
    %v433 = vunpack.c.l.b16 %v394
    %v434 = vunpack.c.l.b16 %v395
    %v435 = vunpack.c.l.b16 %v396
    %v436 = vunpack.c.l.b16 %v397
    %v437 = vunpack.c.l.b16 %v398
    %v438 = vpack.c.b16 %v423, %v422
    %v439 = vpack.c.b16 %v425, %v424
    %v440 = vpack.c.b16 %v427, %v426
    %v441 = vpack.c.b16 %v429, %v428
    %v442 = vpack.c.b16 %v431, %v430
    %v443 = vpack.c.b16 %v433, %v432
    %v444 = vpack.c.b16 %v435, %v434
    %v445 = vpack.c.b16 %v437, %v436
    %454 = vmatprep.subr.bf16.mxu0 0
    %455 = vmatpush1.bf16.msra.mxu0 %v445
    %456 = vmatprep.subr.bf16.mxu0 0
    %457 = vmatpush1.bf16.msra.mxu0 %v444
    %458 = vmatprep.subr.bf16.mxu0 0
    %459 = vmatpush1.bf16.msra.mxu0 %v443
    %460 = vmatprep.subr.bf16.mxu0 0
    %461 = vmatpush1.bf16.msra.mxu0 %v442
    %462 = vmatprep.subr.bf16.mxu0 0
    %463 = vmatpush1.bf16.msra.mxu0 %v441
    %464 = vmatprep.subr.bf16.mxu0 0
    %465 = vmatpush1.bf16.msra.mxu0 %v440
    %466 = vmatprep.subr.bf16.mxu0 0
    %467 = vmatpush1.bf16.msra.mxu0 %v439
    %468 = vmatprep.subr.bf16.mxu0 0
    %469 = vmatpush1.bf16.msra.mxu0 %v438
    %470 = vmatprep.subr.bf16.mxu0 0
    %471 = vmatpush2.bf16.msra.mxu0 0
    %472 = vmatprep.subr.bf16.mxu0 0
    %473 = vmatpush2.bf16.msra.mxu0 0
    %474 = vmatprep.subr.bf16.mxu0 0
    %475 = vmatpush2.bf16.msra.mxu0 0
    %476 = vmatprep.subr.bf16.mxu0 0
    %477 = vmatpush2.bf16.msra.mxu0 0
    %478 = vmatprep.subr.bf16.mxu0 0
    %479 = vmatpush2.bf16.msra.mxu0 0
    %480 = vmatprep.subr.bf16.mxu0 0
    %481 = vmatpush2.bf16.msra.mxu0 0
    %482 = vmatprep.subr.bf16.mxu0 0
    %483 = vmatpush2.bf16.msra.mxu0 0
    %484 = vmatprep.subr.bf16.mxu0 0
    %485 = vmatpush2.bf16.msra.mxu0 0
    %486 = vmatprep.mubr.bf16.mxu0 0
    %487 = vmatmul.mubr.bf16.gmra.mxu0 %v382
    %v488 = vpop.f32.mrf.mxu0
    %v489 = vadd.f32 %v404, %v488
    %v490 = vpop.f32.mrf.mxu0
    %v491 = vpop.f32.mrf.mxu0
    %v492 = vadd.f32 %v404, %v491
    %v493 = vpop.f32.mrf.mxu0
    %494 = vdwg.mxu0
    %v495 = vpack.c.bf16 %v492, %v489
    %v497 = vunpack.c.l.b16 %v495
    %v498 = vunpack.c.h.b16 %v495
    %v499 = vpack.c.b16 %v497, %v497
    %v500 = vpack.c.b16 %v498, %v498
    %503 = vst [vmem:[%s9] sm:$0xf] %v499
    %504 = vst [vmem:[%s9 + $0x4] sm:$0xf] %v500
    // Predicated region
    $region50: #{qnetwork_forward.1} parent=1 // pred_check
      _
    $region51: #{qnetwork_forward.1} parent=1 // pred_check_branch
      %506 = sbr.rel (0) target = $region53
    $region52: #{qnetwork_forward.1} parent=1 // pred_region
      _
    $region53: #{qnetwork_forward.1} parent=1 // pred_fallthru
      _
    // Predicated region
    $region54: #{qnetwork_forward.1} parent=1 // pred_check
      _
    $region55: #{qnetwork_forward.1} parent=1 // pred_check_branch
      %508 = sbr.rel (0) target = $region57
    $region56: #{qnetwork_forward.1} parent=1 // pred_region
      _
    $region57: #{qnetwork_forward.1} parent=1 // pred_fallthru
      _
    %509 = vsyncpa [#allocation3], 1
    %510 = vsyncpa [#allocation5], 1

</llo_original>
